<compile_context>
chip_gen: v6e
topology: v6e:2x2x1
jax: 0.10.0
libtpu: 0.0.40
codegen_flags: <defaults>
</compile_context>

<pallas_src>
import jax
import jax.numpy as jnp
from jax import lax
from jax.experimental import pallas as pl
from jax.experimental.pallas import tpu as pltpu

_SUB = 8  # rows per in-kernel sub-tile (one sublane group)


def _round_up(n, m):
    return ((n + m - 1) // m) * m


def _vmem_capacity_bytes():
    try:
        return int(pltpu.get_tpu_info().vmem_capacity_bytes)
    except Exception:
        return 64 * 1024 * 1024  # conservative fallback: assume v7x-sized VMEM


def _make_nconv_kernel(J, K, Ti, j_chunk, sub=_SUB):
    n_sub = Ti // sub
    n_full = J // j_chunk
    j_tail = J - n_full * j_chunk

    def load_product(x_ref, a_ref, r0, j0, cj):
        # (sub, cj, L) -> broadcast across K lanes -> (sub, cj, K*L), f32
        xc = x_ref[pl.ds(r0, sub), pl.ds(j0, cj), :].astype(jnp.float32)
        xc = jnp.tile(xc, (1, 1, K))
        ac = a_ref[pl.ds(r0, sub), pl.ds(j0, cj), :].astype(jnp.float32)
        return xc * ac

    def kernel(x_ref, a_ref, o_ref):
        # x_ref: (Ti, J, L)   a_ref: (Ti, J, K*L)   o_ref: (Ti, K*L)
        def sub_body(s, carry):
            r0 = pl.multiple_of(s * sub, sub)
            # chunk 0 initializes the 3-D accumulator (no zeros + add)
            acc3 = load_product(x_ref, a_ref, r0, 0, j_chunk)
            if n_full > 1:
                def chunk_body(c, acc):
                    j0 = pl.multiple_of(c * j_chunk, j_chunk)
                    return acc + load_product(x_ref, a_ref, r0, j0, j_chunk)
                acc3 = lax.fori_loop(1, n_full, chunk_body, acc3,
                                     unroll=(True if n_full <= 9 else 8))
            # Single sublane (XLU) reduction per sub-tile (hoisted out of the
            # chunk loop: the chunk loop itself is pure VALU accumulation).
            acc2 = jnp.sum(acc3, axis=1)
            if j_tail:
                tail = load_product(x_ref, a_ref, r0, n_full * j_chunk, j_tail)
                acc2 = acc2 + jnp.sum(tail, axis=1)
            o_ref[pl.ds(r0, sub), :] = acc2.astype(o_ref.dtype)
            return carry

        lax.fori_loop(0, n_sub, sub_body, 0, unroll=(n_sub <= 4))

    return kernel


def dynamic_nconv(x, A):
    """Pallas TPU equivalent of torch.einsum('bijl,bijkl->bikl', x, A)."""
    B, I, J, L = x.shape
    Bb, Ii, Jj, K, Ll = A.shape
    assert (B, I, J, L) == (Bb, Ii, Jj, Ll), "shape mismatch between x and A"
    KL = K * L
    BI = B * I

    out_dtype = jnp.result_type(x.dtype, A.dtype)
    a_isz = jnp.dtype(A.dtype).itemsize
    x_isz = jnp.dtype(x.dtype).itemsize
    o_isz = jnp.dtype(out_dtype).itemsize

    # ---- fold (B,I) -> rows and (K,L) -> lane-dense K*L (contiguous, free) ----
    x2 = x.reshape(BI, J, L)
    A2 = A.reshape(BI, J, KL)
    BI_pad = _round_up(BI, 8)
    if BI_pad != BI:
        pad = BI_pad - BI
        x2 = jnp.pad(x2, ((0, pad), (0, 0), (0, 0)))
        A2 = jnp.pad(A2, ((0, pad), (0, 0), (0, 0)))

    # ---- per-generation VMEM budgets -----------------------------------------
    cap = _vmem_capacity_bytes()
    if cap >= 100 * 2**20:            # v5e / v6e: 128 MiB physical VMEM
        vmem_limit = 96 * 2**20
        a_block_cap = 16 * 2**20
    else:                             # v7x-class (64 MiB) or unknown
        vmem_limit = 40 * 2**20
        a_block_cap = 6 * 2**20
    per_step_budget = vmem_limit - 6 * 2**20   # internal-scratch / temp headroom

    # ---- honest per-step footprint (double-buffered, VMEM-padded) ------------
    J_pad = _round_up(J, 8)
    L_pad = _round_up(L, 128)
    KL_pad = _round_up(KL, 128)

    def footprint(rows):
        a_blk = rows * J_pad * KL_pad * a_isz
        x_blk = rows * J_pad * L_pad * x_isz      # x is lane-padded in VMEM
        o_blk = rows * KL_pad * o_isz
        return a_blk, 2 * (a_blk + x_blk + o_blk)  # x2 = double buffering

    candidates = [d for d in range(8, BI_pad + 1, 8) if BI_pad % d == 0]
    fitting = [d for d in candidates
               if footprint(d)[0] <= a_block_cap
               and footprint(d)[1] <= per_step_budget]
    if fitting:
        multi = [d for d in fitting if BI_pad // d >= 2]   # keep >=2 grid steps
        Ti = max(multi) if multi else max(fitting)         # for v7x's two TCs
    else:
        Ti = candidates[0]                                  # best effort
        vmem_limit = min(cap, footprint(Ti)[1] + 8 * 2**20)

    num_tiles = BI_pad // Ti
    # j_chunk keeps the f32 acc3 (8, j_chunk, KL_pad) within ~8 vregs.
    j_chunk = max(1, min(J, 8, 1024 // KL_pad))

    kernel = _make_nconv_kernel(J, K, Ti, j_chunk)

    cost = pl.CostEstimate(
        flops=2 * B * I * J * K * L,
        bytes_accessed=int(x.size) * x_isz + int(A.size) * a_isz + B * I * KL * o_isz,
        transcendentals=0,
    )

    out2 = pl.pallas_call(
        kernel,
        out_shape=jax.ShapeDtypeStruct((BI_pad, KL), out_dtype),
        grid=(num_tiles,),
        in_specs=[
            pl.BlockSpec((Ti, J, L), lambda t: (t, 0, 0)),   # x rows slab
            pl.BlockSpec((Ti, J, KL), lambda t: (t, 0, 0)),  # A rows slab (lane-dense)
        ],
        out_specs=pl.BlockSpec((Ti, KL), lambda t: (t, 0)),
        compiler_params=pltpu.CompilerParams(
            dimension_semantics=("parallel",),
            vmem_limit_bytes=int(vmem_limit),
        ),
        cost_estimate=cost,
    )(x2, A2)

    return out2[:BI].reshape(B, I, K, L)


if __name__ == "__main__":
    # Small deterministic shapes: B=2, I=4 (channels), J=8 (contracted),
    # K=8, L=16 (sequence).  K*L = 128 -> lane-dense output blocks.
    B, I, J, K, L = 2, 4, 8, 8, 16
    key = jax.random.PRNGKey(0)
    kx, ka = jax.random.split(key)
    x = jax.random.normal(kx, (B, I, J, L), dtype=jnp.float32)
    A = jax.random.normal(ka, (B, I, J, K, L), dtype=jnp.float32)

    out = jax.block_until_ready(dynamic_nconv(x, A))

    # Reference check against plain-JAX einsum (same semantics as the torch module).
    ref = jnp.einsum("bijl,bijkl->bikl", x, A)
    assert out.shape == (B, I, K, L)
    assert jnp.allclose(out, ref, atol=1e-5, rtol=1e-5), "mismatch vs reference"

    print("KERNEL_OK")
</pallas_src>

<mosaic_0001>
module attributes {stable_mosaic.version = 11 : i64} {
  func.func @kernel(%arg0: i32, %arg1: memref<8x8x16xf32, #tpu.memory_space<vmem>>, %arg2: memref<8x8x128xf32, #tpu.memory_space<vmem>>, %arg3: memref<8x128xf32, #tpu.memory_space<vmem>>) attributes {dimension_semantics = [#tpu.dimension_semantics<parallel>], iteration_bounds = array<i64: 1>, scalar_prefetch = 0 : i64, scratch_operands = 0 : i64, tpu.core_type = #tpu.core_type<tc>, window_params = [{transform_indices = @transform_0, window_bounds = array<i64: 8, 8, 16>}, {transform_indices = @transform_1, window_bounds = array<i64: 8, 8, 128>}, {transform_indices = @transform_2, window_bounds = array<i64: 8, 128>}]} {
    %c0_i32 = arith.constant 0 : i32
    %c8_i32 = arith.constant 8 : i32
    %0 = arith.muli %c0_i32, %c8_i32 : i32
    %1 = tpu.assume_multiple %0, 8 : i32
    %2 = arith.index_cast %1 : i32 to index
    %c0 = arith.constant 0 : index
    %c0_0 = arith.constant 0 : index
    %3 = vector.load %arg1[%2, %c0, %c0_0] : memref<8x8x16xf32, #tpu.memory_space<vmem>>, vector<8x8x16xf32>
    %4 = tpu.concatenate %3, %3, %3, %3, %3, %3, %3, %3 in 2 : vector<8x8x16xf32>, vector<8x8x16xf32>, vector<8x8x16xf32>, vector<8x8x16xf32>, vector<8x8x16xf32>, vector<8x8x16xf32>, vector<8x8x16xf32>, vector<8x8x16xf32> -> vector<8x8x128xf32>
    %5 = arith.index_cast %1 : i32 to index
    %c0_1 = arith.constant 0 : index
    %c0_2 = arith.constant 0 : index
    %6 = vector.load %arg2[%5, %c0_1, %c0_2] : memref<8x8x128xf32, #tpu.memory_space<vmem>>, vector<8x8x128xf32>
    %7 = arith.mulf %4, %6 : vector<8x8x128xf32>
    %cst = arith.constant dense<0.000000e+00> : vector<8x128xf32>
    %8 = vector.multi_reduction <add>, %7, %cst [1] : vector<8x8x128xf32> to vector<8x128xf32>
    %9 = arith.index_cast %1 : i32 to index
    %c0_3 = arith.constant 0 : index
    %10 = vector.load %arg3[%9, %c0_3] : memref<8x128xf32, #tpu.memory_space<vmem>>, vector<8x128xf32>
    tpu.vector_store %arg3[%9, %c0_3], %8 {strides = array<i32>} : memref<8x128xf32, #tpu.memory_space<vmem>>, vector<8x128xf32>,
    %c1_i32 = arith.constant 1 : i32
    return
  }
  func.func @transform_0(%arg0: i32) -> (i32, i32, i32) {
    %c0_i32 = arith.constant 0 : i32
    %c0_i32_0 = arith.constant 0 : i32
    %c0_i32_1 = arith.constant 0 : i32
    return %arg0, %c0_i32, %c0_i32_0 : i32, i32, i32
  }
  func.func @transform_1(%arg0: i32) -> (i32, i32, i32) {
    %c0_i32 = arith.constant 0 : i32
    %c0_i32_0 = arith.constant 0 : i32
    %c0_i32_1 = arith.constant 0 : i32
    return %arg0, %c0_i32, %c0_i32_0 : i32, i32, i32
  }
  func.func @transform_2(%arg0: i32) -> (i32, i32) {
    %c0_i32 = arith.constant 0 : i32
    %c0_i32_0 = arith.constant 0 : i32
    return %arg0, %c0_i32 : i32, i32
  }
}

</mosaic_0001>

<llo_original>
// kernel: tpu_custom_call.1
$region0: #{tpu_custom_call.1}
  #allocation0 [shape = 'u32[]', space=smem, size = 0x4, offset = 0x4, fixed_abs, tag = 'smem constant byte address 0x4 - core index']
  #allocation1 [shape = 'u32[144,128]{1,0:T(1,128)}', space=vmem, size = 0x12000, scoped, tag = 'internal scratch']
  %s0 = inlined_call_operand.hbm [shape: f32[8,8,16], index: 0, kind: input, shape index: {}]
  %s1 = inlined_call_operand.hbm [shape: f32[8,8,128], index: 1, kind: input, shape index: {}]
  %s2 = inlined_call_operand.hbm [shape: f32[8,128], index: 2, kind: output, shape index: {}]
  %s3 = sld [smem:[#allocation0]]
  $region26: #{tpu_custom_call.1} parent=0
    _
  %s5 = ssub.s32 1, %s3
  %s6 = scalar_select 0, %s5, %s3
  $region1: #{tpu_custom_call.1} parent=0
    #allocation2 [shape = 'u8[32768]{0}', space=vmem, size = 0x8000, scoped, tag = 'input window, operand 0, single buffered']
    #allocation3 [shape = 's32[1]{0}', space=sflag, size = 0x4, scoped, tag = 'scoped memory for tpu_custom_call.1']
    #allocation4 [shape = 's32[1]{0}', space=sflag, size = 0x4, scoped, tag = 'scoped memory for tpu_custom_call.1']
    #allocation5 [shape = 'u8[32768]{0}', space=vmem, size = 0x8000, scoped, tag = 'input window, operand 1, single buffered']
    #allocation6 [shape = 's32[1]{0}', space=sflag, size = 0x4, scoped, tag = 'scoped memory for tpu_custom_call.1']
    #allocation7 [shape = 'u8[4096]{0}', space=vmem, size = 0x1000, scoped, tag = 'output window, operand 0, single buffered']
    %7 = vsyncpa [#allocation3], 0
    %8 = vsyncpa [#allocation6], 0
    %9 = vsyncpa [#allocation4], 0
    // Predicated region
    $region2: #{tpu_custom_call.1} parent=1 // pred_check
      _
    $region3: #{tpu_custom_call.1} parent=1 // pred_check_branch
      %11 = sbr.rel (0) target = $region5
    $region4: #{tpu_custom_call.1} parent=1 // pred_region
      %s13 = ssub.s32 1024, 1024
      %14 = vsyncadd [#allocation3], %s13
      %s15 = sshll.u32 [#allocation2], 4
      %s16 = int_to_ptr.vmem [resolvable:$true] %s15
      %21 = dma.hbm_to_vmem [thread:$0]  %s0, 1024, %s16, [#allocation3], 128, 128, 8
    $region5: #{tpu_custom_call.1} parent=1 // pred_fallthru
      _
    // Predicated region
    $region6: #{tpu_custom_call.1} parent=1 // pred_check
      _
    $region7: #{tpu_custom_call.1} parent=1 // pred_check_branch
      %23 = sbr.rel (0) target = $region9
    $region8: #{tpu_custom_call.1} parent=1 // pred_region
      %s25 = ssub.s32 1024, 1024
      %26 = vsyncadd [#allocation6], %s25
      %s27 = sshll.u32 [#allocation5], 4
      %s28 = int_to_ptr.vmem [resolvable:$true] %s27
      %33 = dma.hbm_to_vmem [thread:$0]  %s1, 1024, %s28, [#allocation6], 128, 128, 8
    $region9: #{tpu_custom_call.1} parent=1 // pred_fallthru
      _
    // Predicated region
    $region10: #{tpu_custom_call.1} parent=1 // pred_check
      _
    $region11: #{tpu_custom_call.1} parent=1 // pred_check_branch
      %35 = sbr.rel (0) target = $region13
    $region12: #{tpu_custom_call.1} parent=1 // pred_region
      %36 = dma.done [#allocation3], 1024
    $region13: #{tpu_custom_call.1} parent=1 // pred_fallthru
      _
    // Predicated region
    $region14: #{tpu_custom_call.1} parent=1 // pred_check
      _
    $region15: #{tpu_custom_call.1} parent=1 // pred_check_branch
      %38 = sbr.rel (0) target = $region17
    $region16: #{tpu_custom_call.1} parent=1 // pred_region
      %39 = dma.done [#allocation6], 1024
    $region17: #{tpu_custom_call.1} parent=1 // pred_fallthru
      _
    %s40 = smul.u32 0, 8
    %s41 = scalar_lea.vmem [#allocation2], %s40
    %v42 = vld [vmem:[%s41] sm:$0xff]
    %v43 = vld [vmem:[%s41 + $0x8] sm:$0xff]
    %v44 = vld [vmem:[%s41 + $0x10] sm:$0xff]
    %v45 = vld [vmem:[%s41 + $0x18] sm:$0xff]
    %v46 = vld [vmem:[%s41 + $0x20] sm:$0xff]
    %v47 = vld [vmem:[%s41 + $0x28] sm:$0xff]
    %v48 = vld [vmem:[%s41 + $0x30] sm:$0xff]
    %v49 = vld [vmem:[%s41 + $0x38] sm:$0xff]
    %58 = vrot.lane.b32.xlu0 %v42, 16
    %v59 = vpop.permute.xlu0 %58
    %60 = vrot.lane.b32.xlu0 %v43, 16
    %v61 = vpop.permute.xlu0 %60
    %62 = vrot.lane.b32.xlu0 %v44, 16
    %v63 = vpop.permute.xlu0 %62
    %64 = vrot.lane.b32.xlu0 %v45, 16
    %v65 = vpop.permute.xlu0 %64
    %66 = vrot.lane.b32.xlu0 %v46, 16
    %v67 = vpop.permute.xlu0 %66
    %68 = vrot.lane.b32.xlu0 %v47, 16
    %v69 = vpop.permute.xlu0 %68
    %70 = vrot.lane.b32.xlu0 %v48, 16
    %v71 = vpop.permute.xlu0 %70
    %72 = vrot.lane.b32.xlu0 %v49, 16
    %v73 = vpop.permute.xlu0 %72
    %82 = vrot.lane.b32.xlu0 %v42, 32
    %v83 = vpop.permute.xlu0 %82
    %84 = vrot.lane.b32.xlu0 %v43, 32
    %v85 = vpop.permute.xlu0 %84
    %86 = vrot.lane.b32.xlu0 %v44, 32
    %v87 = vpop.permute.xlu0 %86
    %88 = vrot.lane.b32.xlu0 %v45, 32
    %v89 = vpop.permute.xlu0 %88
    %90 = vrot.lane.b32.xlu0 %v46, 32
    %v91 = vpop.permute.xlu0 %90
    %92 = vrot.lane.b32.xlu0 %v47, 32
    %v93 = vpop.permute.xlu0 %92
    %94 = vrot.lane.b32.xlu0 %v48, 32
    %v95 = vpop.permute.xlu0 %94
    %96 = vrot.lane.b32.xlu0 %v49, 32
    %v97 = vpop.permute.xlu0 %96
    %106 = vrot.lane.b32.xlu0 %v42, 48
    %v107 = vpop.permute.xlu0 %106
    %108 = vrot.lane.b32.xlu0 %v43, 48
    %v109 = vpop.permute.xlu0 %108
    %110 = vrot.lane.b32.xlu0 %v44, 48
    %v111 = vpop.permute.xlu0 %110
    %112 = vrot.lane.b32.xlu0 %v45, 48
    %v113 = vpop.permute.xlu0 %112
    %114 = vrot.lane.b32.xlu0 %v46, 48
    %v115 = vpop.permute.xlu0 %114
    %116 = vrot.lane.b32.xlu0 %v47, 48
    %v117 = vpop.permute.xlu0 %116
    %118 = vrot.lane.b32.xlu0 %v48, 48
    %v119 = vpop.permute.xlu0 %118
    %120 = vrot.lane.b32.xlu0 %v49, 48
    %v121 = vpop.permute.xlu0 %120
    %130 = vrot.lane.b32.xlu0 %v42, 64
    %v131 = vpop.permute.xlu0 %130
    %132 = vrot.lane.b32.xlu0 %v43, 64
    %v133 = vpop.permute.xlu0 %132
    %134 = vrot.lane.b32.xlu0 %v44, 64
    %v135 = vpop.permute.xlu0 %134
    %136 = vrot.lane.b32.xlu0 %v45, 64
    %v137 = vpop.permute.xlu0 %136
    %138 = vrot.lane.b32.xlu0 %v46, 64
    %v139 = vpop.permute.xlu0 %138
    %140 = vrot.lane.b32.xlu0 %v47, 64
    %v141 = vpop.permute.xlu0 %140
    %142 = vrot.lane.b32.xlu0 %v48, 64
    %v143 = vpop.permute.xlu0 %142
    %144 = vrot.lane.b32.xlu0 %v49, 64
    %v145 = vpop.permute.xlu0 %144
    %154 = vrot.lane.b32.xlu0 %v42, 80
    %v155 = vpop.permute.xlu0 %154
    %156 = vrot.lane.b32.xlu0 %v43, 80
    %v157 = vpop.permute.xlu0 %156
    %158 = vrot.lane.b32.xlu0 %v44, 80
    %v159 = vpop.permute.xlu0 %158
    %160 = vrot.lane.b32.xlu0 %v45, 80
    %v161 = vpop.permute.xlu0 %160
    %162 = vrot.lane.b32.xlu0 %v46, 80
    %v163 = vpop.permute.xlu0 %162
    %164 = vrot.lane.b32.xlu0 %v47, 80
    %v165 = vpop.permute.xlu0 %164
    %166 = vrot.lane.b32.xlu0 %v48, 80
    %v167 = vpop.permute.xlu0 %166
    %168 = vrot.lane.b32.xlu0 %v49, 80
    %v169 = vpop.permute.xlu0 %168
    %178 = vrot.lane.b32.xlu0 %v42, 96
    %v179 = vpop.permute.xlu0 %178
    %180 = vrot.lane.b32.xlu0 %v43, 96
    %v181 = vpop.permute.xlu0 %180
    %182 = vrot.lane.b32.xlu0 %v44, 96
    %v183 = vpop.permute.xlu0 %182
    %184 = vrot.lane.b32.xlu0 %v45, 96
    %v185 = vpop.permute.xlu0 %184
    %186 = vrot.lane.b32.xlu0 %v46, 96
    %v187 = vpop.permute.xlu0 %186
    %188 = vrot.lane.b32.xlu0 %v47, 96
    %v189 = vpop.permute.xlu0 %188
    %190 = vrot.lane.b32.xlu0 %v48, 96
    %v191 = vpop.permute.xlu0 %190
    %192 = vrot.lane.b32.xlu0 %v49, 96
    %v193 = vpop.permute.xlu0 %192
    %202 = vrot.lane.b32.xlu0 %v42, 112
    %v203 = vpop.permute.xlu0 %202
    %204 = vrot.lane.b32.xlu0 %v43, 112
    %v205 = vpop.permute.xlu0 %204
    %206 = vrot.lane.b32.xlu0 %v44, 112
    %v207 = vpop.permute.xlu0 %206
    %208 = vrot.lane.b32.xlu0 %v45, 112
    %v209 = vpop.permute.xlu0 %208
    %210 = vrot.lane.b32.xlu0 %v46, 112
    %v211 = vpop.permute.xlu0 %210
    %212 = vrot.lane.b32.xlu0 %v47, 112
    %v213 = vpop.permute.xlu0 %212
    %214 = vrot.lane.b32.xlu0 %v48, 112
    %v215 = vpop.permute.xlu0 %214
    %216 = vrot.lane.b32.xlu0 %v49, 112
    %v217 = vpop.permute.xlu0 %216
    %vm226 = vcmask 130048
    %v227 = vsel %vm226, %v42, %v59
    %v228 = vsel %vm226, %v43, %v61
    %v229 = vsel %vm226, %v44, %v63
    %v230 = vsel %vm226, %v45, %v65
    %v231 = vsel %vm226, %v46, %v67
    %v232 = vsel %vm226, %v47, %v69
    %v233 = vsel %vm226, %v48, %v71
    %v234 = vsel %vm226, %v49, %v73
    %vm235 = vcmask 261120
    %v236 = vsel %vm235, %v227, %v83
    %v237 = vsel %vm235, %v228, %v85
    %v238 = vsel %vm235, %v229, %v87
    %v239 = vsel %vm235, %v230, %v89
    %v240 = vsel %vm235, %v231, %v91
    %v241 = vsel %vm235, %v232, %v93
    %v242 = vsel %vm235, %v233, %v95
    %v243 = vsel %vm235, %v234, %v97
    %vm244 = vcmask 392192
    %v245 = vsel %vm244, %v236, %v107
    %v246 = vsel %vm244, %v237, %v109
    %v247 = vsel %vm244, %v238, %v111
    %v248 = vsel %vm244, %v239, %v113
    %v249 = vsel %vm244, %v240, %v115
    %v250 = vsel %vm244, %v241, %v117
    %v251 = vsel %vm244, %v242, %v119
    %v252 = vsel %vm244, %v243, %v121
    %vm253 = vcmask 523264
    %v254 = vsel %vm253, %v245, %v131
    %v255 = vsel %vm253, %v246, %v133
    %v256 = vsel %vm253, %v247, %v135
    %v257 = vsel %vm253, %v248, %v137
    %v258 = vsel %vm253, %v249, %v139
    %v259 = vsel %vm253, %v250, %v141
    %v260 = vsel %vm253, %v251, %v143
    %v261 = vsel %vm253, %v252, %v145
    %vm262 = vcmask 654336
    %v263 = vsel %vm262, %v254, %v155
    %v264 = vsel %vm262, %v255, %v157
    %v265 = vsel %vm262, %v256, %v159
    %v266 = vsel %vm262, %v257, %v161
    %v267 = vsel %vm262, %v258, %v163
    %v268 = vsel %vm262, %v259, %v165
    %v269 = vsel %vm262, %v260, %v167
    %v270 = vsel %vm262, %v261, %v169
    %vm271 = vcmask 785408
    %v272 = vsel %vm271, %v263, %v179
    %v273 = vsel %vm271, %v264, %v181
    %v274 = vsel %vm271, %v265, %v183
    %v275 = vsel %vm271, %v266, %v185
    %v276 = vsel %vm271, %v267, %v187
    %v277 = vsel %vm271, %v268, %v189
    %v278 = vsel %vm271, %v269, %v191
    %v279 = vsel %vm271, %v270, %v193
    %vm280 = vcmask 916480
    %v281 = vsel %vm280, %v272, %v203
    %v282 = vsel %vm280, %v273, %v205
    %v283 = vsel %vm280, %v274, %v207
    %v284 = vsel %vm280, %v275, %v209
    %v285 = vsel %vm280, %v276, %v211
    %v286 = vsel %vm280, %v277, %v213
    %v287 = vsel %vm280, %v278, %v215
    %v288 = vsel %vm280, %v279, %v217
    %s289 = scalar_lea.vmem [#allocation5], %s40
    %v290 = vld [vmem:[%s289] sm:$0xff]
    %v291 = vld [vmem:[%s289 + $0x8] sm:$0xff]
    %v292 = vld [vmem:[%s289 + $0x10] sm:$0xff]
    %v293 = vld [vmem:[%s289 + $0x18] sm:$0xff]
    %v294 = vld [vmem:[%s289 + $0x20] sm:$0xff]
    %v295 = vld [vmem:[%s289 + $0x28] sm:$0xff]
    %v296 = vld [vmem:[%s289 + $0x30] sm:$0xff]
    %v297 = vld [vmem:[%s289 + $0x38] sm:$0xff]
    %v298 = vmul.f32 %v281, %v290
    %v299 = vmul.f32 %v282, %v291
    %v300 = vmul.f32 %v283, %v292
    %v301 = vmul.f32 %v284, %v293
    %v302 = vmul.f32 %v285, %v294
    %v303 = vmul.f32 %v286, %v295
    %v304 = vmul.f32 %v287, %v296
    %v305 = vmul.f32 %v288, %v297
    %v306 = vrot.slane %v298, 4
    %v307 = vadd.f32 %v298, %v306
    %v308 = vrot.slane %v307, 2
    %v309 = vadd.f32 %v307, %v308
    %v310 = vrot.slane %v309, 1
    %v311 = vadd.f32 %v309, %v310
    %v312 = vrot.slane %v299, 4
    %v313 = vadd.f32 %v299, %v312
    %v314 = vrot.slane %v313, 2
    %v315 = vadd.f32 %v313, %v314
    %v316 = vrot.slane %v315, 1
    %v317 = vadd.f32 %v315, %v316
    %v318 = vrot.slane %v300, 4
    %v319 = vadd.f32 %v300, %v318
    %v320 = vrot.slane %v319, 2
    %v321 = vadd.f32 %v319, %v320
    %v322 = vrot.slane %v321, 1
    %v323 = vadd.f32 %v321, %v322
    %v324 = vrot.slane %v301, 4
    %v325 = vadd.f32 %v301, %v324
    %v326 = vrot.slane %v325, 2
    %v327 = vadd.f32 %v325, %v326
    %v328 = vrot.slane %v327, 1
    %v329 = vadd.f32 %v327, %v328
    %v330 = vrot.slane %v302, 4
    %v331 = vadd.f32 %v302, %v330
    %v332 = vrot.slane %v331, 2
    %v333 = vadd.f32 %v331, %v332
    %v334 = vrot.slane %v333, 1
    %v335 = vadd.f32 %v333, %v334
    %v336 = vrot.slane %v303, 4
    %v337 = vadd.f32 %v303, %v336
    %v338 = vrot.slane %v337, 2
    %v339 = vadd.f32 %v337, %v338
    %v340 = vrot.slane %v339, 1
    %v341 = vadd.f32 %v339, %v340
    %v342 = vrot.slane %v304, 4
    %v343 = vadd.f32 %v304, %v342
    %v344 = vrot.slane %v343, 2
    %v345 = vadd.f32 %v343, %v344
    %v346 = vrot.slane %v345, 1
    %v347 = vadd.f32 %v345, %v346
    %v348 = vrot.slane %v305, 4
    %v349 = vadd.f32 %v305, %v348
    %v350 = vrot.slane %v349, 2
    %v351 = vadd.f32 %v349, %v350
    %v352 = vrot.slane %v351, 1
    %v353 = vadd.f32 %v351, %v352
    %vm362 = vcmask 1041409
    %v363 = vsel %vm362, %v317, %v311
    %vm364 = vcmask 1042434
    %v365 = vsel %vm364, %v323, %v363
    %vm366 = vcmask 1043459
    %v367 = vsel %vm366, %v329, %v365
    %vm368 = vcmask 1044484
    %v369 = vsel %vm368, %v335, %v367
    %vm370 = vcmask 1045509
    %v371 = vsel %vm370, %v341, %v369
    %vm372 = vcmask 1046534
    %v373 = vsel %vm372, %v347, %v371
    %vm374 = vcmask 1047559
    %v375 = vsel %vm374, %v353, %v373
    %377 = vst [vmem:[#allocation7] sm:$0xff] %v375
    // Predicated region
    $region18: #{tpu_custom_call.1} parent=1 // pred_check
      _
    $region19: #{tpu_custom_call.1} parent=1 // pred_check_branch
      %379 = sbr.rel (0) target = $region21
    $region20: #{tpu_custom_call.1} parent=1 // pred_region
      %s381 = ssub.s32 128, 128
      %382 = vsyncadd [#allocation4], %s381
      %s384 = sshll.u32 [#allocation7], 4
      %s385 = int_to_ptr.vmem [resolvable:$true] %s384
      %387 = dma.vmem_to_hbm [thread:$0]  %s385, 128, %s2, [#allocation4]
    $region21: #{tpu_custom_call.1} parent=1 // pred_fallthru
      _
    // Predicated region
    $region22: #{tpu_custom_call.1} parent=1 // pred_check
      _
    $region23: #{tpu_custom_call.1} parent=1 // pred_check_branch
      %389 = sbr.rel (0) target = $region25
    $region24: #{tpu_custom_call.1} parent=1 // pred_region
      %390 = dma.done [#allocation4], 128
    $region25: #{tpu_custom_call.1} parent=1 // pred_fallthru
      _
    %391 = vsyncpa [#allocation3], 1
    %392 = vsyncpa [#allocation6], 1
    %393 = vsyncpa [#allocation4], 1

</llo_original>
